<compile_context>
chip_gen: v5e
topology: v5e:2x2
jax: 0.10.0
libtpu: 0.0.40
codegen_flags: <defaults>
</compile_context>

<pallas_src>
import functools

import jax
import jax.numpy as jnp
from jax import lax
from jax.experimental import pallas as pl
from jax.experimental.pallas import tpu as pltpu


_MAX_TILE_ROWS = 512     # rows per grid step (multiple of 8); sized so that
                         # double-buffered (flat, qprev, qnew) tiles + the
                         # resident codebook stay well under v7x's 64 MiB VMEM.


def _round_up(x, m):
    return (x + m - 1) // m * m


# ---------------------------------------------------------------------------
# Pallas kernel: one VQ stage on a tile of rows.
#   flat_ref : (tn, D)  original rows
#   qprev_ref: (tn, D)  running quantized sum (residual = flat - qprev)
#   e_ref    : (K, D)   codebook (resident block, constant index_map)
#   esq_ref  : (1, K)   precomputed per-code squared norms
# outputs:
#   qnew_ref : (tn, D)  qprev + nearest-code rows (aliased onto qprev buffer)
#   idx_ref  : (tn, 1)  int32 nearest-code indices
#   sse_ref  : (tn, 1)  per-row squared error ||q - x||^2
# ---------------------------------------------------------------------------
def _vq_kernel(flat_ref, qprev_ref, e_ref, esq_ref, qnew_ref, idx_ref, sse_ref):
    qprev = qprev_ref[...]
    x = flat_ref[...] - qprev                       # residual, (tn, D) f32
    e = e_ref[...]                                  # (K, D)

    # ||x||^2 - 2 x.E^T + ||e||^2  -> (tn, K); x.E^T runs on the MXU.
    dots = lax.dot_general(x, e, (((1,), (1,)), ((), ())),
                           preferred_element_type=jnp.float32)
    x_sq = jnp.sum(x * x, axis=1, keepdims=True)
    dist = x_sq - 2.0 * dots + esq_ref[...]

    # argmin along K (ties -> smallest index, matching torch.argmin).
    k = dist.shape[1]
    min_d = jnp.min(dist, axis=1, keepdims=True)
    iota = lax.broadcasted_iota(jnp.int32, dist.shape, 1)
    cand = jnp.where(dist == min_d, iota, jnp.int32(k))
    idx = jnp.min(cand, axis=1, keepdims=True)      # (tn, 1)

    # Codebook lookup as an MXU matmul (exact: 0/1 one-hot x f32 codebook).
    onehot = (iota == idx).astype(jnp.float32)      # (tn, K)
    q = jnp.dot(onehot, e, preferred_element_type=jnp.float32)

    diff = q - x
    sse_ref[...] = jnp.sum(diff * diff, axis=1, keepdims=True)
    idx_ref[...] = idx
    qnew_ref[...] = qprev + q


def _vq_pallas(flat_sub, qprev_sub, codebook):
    """One fused VQ stage. flat_sub/qprev_sub: (N, D), codebook: (K, D)."""
    flat_sub = flat_sub.astype(jnp.float32)
    qprev_sub = qprev_sub.astype(jnp.float32)
    codebook = codebook.astype(jnp.float32)

    n, d = flat_sub.shape
    k = codebook.shape[0]
    tn = min(_MAX_TILE_ROWS, _round_up(n, 8))       # large tile; edge block is
    grid = (pl.cdiv(n, tn),)                        # padded/masked by Pallas.

    e_sq = jnp.sum(codebook * codebook, axis=1, keepdims=True).T    # (1, K)

    qnew, idx, sse = pl.pallas_call(
        _vq_kernel,
        out_shape=(jax.ShapeDtypeStruct((n, d), jnp.float32),
                   jax.ShapeDtypeStruct((n, 1), jnp.int32),
                   jax.ShapeDtypeStruct((n, 1), jnp.float32)),
        grid_spec=pltpu.PrefetchScalarGridSpec(
            num_scalar_prefetch=0,
            grid=grid,
            in_specs=[
                pl.BlockSpec((tn, d), lambda i: (i, 0)),   # flat rows tile
                pl.BlockSpec((tn, d), lambda i: (i, 0)),   # running quantized
                pl.BlockSpec((k, d), lambda i: (0, 0)),    # whole codebook
                pl.BlockSpec((1, k), lambda i: (0, 0)),    # code norms
            ],
            out_specs=[
                pl.BlockSpec((tn, d), lambda i: (i, 0)),
                pl.BlockSpec((tn, 1), lambda i: (i, 0)),
                pl.BlockSpec((tn, 1), lambda i: (i, 0)),
            ],
        ),
        # Accumulate the running quantized sum in place: qprev buffer -> qnew.
        input_output_aliases={1: 0},
        compiler_params=pltpu.CompilerParams(
            dimension_semantics=("parallel",)),
    )(flat_sub, qprev_sub, codebook, e_sq)
    return qnew, idx, sse


def _vq_stage(flat_sub, qprev_sub, codebook, commitment_cost):
    """One VectorQuantizer.entropy_forward equivalent (residual/add/MSE fused)."""
    n, d = flat_sub.shape
    k = codebook.shape[0]
    qnew, idx, sse = _vq_pallas(flat_sub, qprev_sub, codebook)

    mse = jnp.sum(sse) / jnp.float32(n * d)
    # q_latent_loss and the commitment (e_latent) loss share this forward value.
    loss = (1.0 + commitment_cost) * mse
    # TODO(synk): straight-through / stop-gradient split for training gradients
    # is not implemented (forward value only).

    counts = jnp.zeros((k,), jnp.float32).at[idx[:, 0]].add(1.0)
    avg_probs = counts / jnp.float32(n)
    entropy = -jnp.sum(avg_probs * jnp.log(avg_probs + 1e-10))
    return qnew, idx, loss, entropy


# ---------------------------------------------------------------------------
# Multi_stage_VQ.forward / entropy_forward
# ---------------------------------------------------------------------------
def multi_stage_vq_forward(data, layers, commitment_cost, using=0):
    input_shape = data.shape
    d = input_shape[-1]
    flat = data.reshape(-1, d).astype(jnp.float32)

    quantized = jnp.zeros_like(flat)
    total_encodings = []
    total_loss = jnp.float32(0.0)
    total_entropy = jnp.float32(0.0)
    stage_cnt = 0

    for stage in layers:
        if not isinstance(stage, (list, tuple)):
            # Full-dim stage: fused kernel updates `quantized` in place.
            quantized, idx, loss, ent = _vq_stage(flat, quantized, stage,
                                                  commitment_cost)
            k = stage.shape[0]
            total_encodings.append(jax.nn.one_hot(idx[:, 0], k,
                                                  dtype=jnp.float32))
            total_loss = total_loss + loss
            total_entropy = total_entropy + ent
        else:
            splits = len(stage)
            sd = d // splits
            new_cols = []
            for i, cb in enumerate(stage):
                f_sub = lax.slice_in_dim(flat, sd * i, sd * (i + 1), axis=1)
                q_sub = lax.slice_in_dim(quantized, sd * i, sd * (i + 1),
                                         axis=1)
                qn_sub, _idx, sloss, sent = _vq_stage(f_sub, q_sub, cb,
                                                      commitment_cost)
                new_cols.append(qn_sub)
                total_loss = total_loss + sloss
                total_entropy = total_entropy + sent
            # Splits partition the feature dim, so concatenation == scatter-add.
            quantized = jnp.concatenate(new_cols, axis=1)
            # NOTE: mirrors the reference module, where split-stage encodings
            # are collected locally but never appended to total_encodings.
        stage_cnt += 1
        if stage_cnt == using:
            break

    quantized = quantized.reshape(input_shape)
    return quantized, total_encodings, total_loss, total_entropy


# ---------------------------------------------------------------------------
# Deterministic parameter construction (mirrors __init__ of Multi_stage_VQ).
# TODO(synk): 'EMA' mode of the reference module is not implemented.
# ---------------------------------------------------------------------------
def make_codebooks(embedding_dim, embedding_structure, key):
    layers = []
    for stage in embedding_structure:
        if isinstance(stage, int):
            key, sub = jax.random.split(key)
            k = stage
            layers.append(jax.random.uniform(
                sub, (k, embedding_dim), jnp.float32,
                minval=-1.0 / k, maxval=1.0 / k))
        elif isinstance(stage, list):
            splits = len(stage)
            if embedding_dim % splits:
                raise ValueError("Can not split embedding dimension")
            sub_layer = []
            for k in stage:
                key, sub = jax.random.split(key)
                sub_layer.append(jax.random.uniform(
                    sub, (k, embedding_dim // splits), jnp.float32,
                    minval=-1.0 / k, maxval=1.0 / k))
            layers.append(sub_layer)
    return layers


if __name__ == "__main__":
    embedding_dim = 32
    commitment_cost = 0.25
    embedding_structure = [64, [32, 32]]   # one full stage + one split stage

    key = jax.random.PRNGKey(0)
    key_data, key_params = jax.random.split(key)

    # data: (Batch, Seq, embedding_dim)  == torch (Batch, *, embedding_dim)
    data = jax.random.normal(key_data, (2, 8, embedding_dim), jnp.float32)
    layers = make_codebooks(embedding_dim, embedding_structure, key_params)

    fwd = jax.jit(functools.partial(multi_stage_vq_forward,
                                    commitment_cost=commitment_cost, using=0))
    quantized, encodings, loss, entropy = fwd(data, layers)

    jax.block_until_ready(quantized)
    for e in encodings:
        jax.block_until_ready(e)
    jax.block_until_ready(loss)
    jax.block_until_ready(entropy)

    assert quantized.shape == data.shape
    assert len(encodings) == 1
    assert encodings[0].shape == (data.shape[0] * data.shape[1], 64)
    assert bool(jnp.isfinite(loss)) and bool(jnp.isfinite(entropy))
    print("KERNEL_OK")
</pallas_src>

<mosaic_0001>
module attributes {stable_mosaic.version = 11 : i64} {
  func.func @_vq_kernel(%arg0: i32, %arg1: memref<16x32xf32, #tpu.memory_space<vmem>>, %arg2: memref<16x32xf32, #tpu.memory_space<vmem>>, %arg3: memref<64x32xf32, #tpu.memory_space<vmem>>, %arg4: memref<1x64xf32, #tpu.memory_space<vmem>>, %arg5: memref<16x32xf32, #tpu.memory_space<vmem>>, %arg6: memref<16x1xi32, #tpu.memory_space<vmem>>, %arg7: memref<16x1xf32, #tpu.memory_space<vmem>>) attributes {dimension_semantics = [#tpu.dimension_semantics<parallel>], iteration_bounds = array<i64: 1>, scalar_prefetch = 0 : i64, scratch_operands = 0 : i64, tpu.core_type = #tpu.core_type<tc>, window_params = [{transform_indices = @transform_0, window_bounds = array<i64: 16, 32>}, {transform_indices = @transform_1, window_bounds = array<i64: 16, 32>}, {pipeline_mode = #tpu.pipeline_mode<synchronous>, transform_indices = @transform_2, window_bounds = array<i64: 64, 32>}, {pipeline_mode = #tpu.pipeline_mode<synchronous>, transform_indices = @transform_3, window_bounds = array<i64: 1, 64>}, {transform_indices = @transform_4, window_bounds = array<i64: 16, 32>}, {transform_indices = @transform_5, window_bounds = array<i64: 16, 1>}, {transform_indices = @transform_6, window_bounds = array<i64: 16, 1>}]} {
    %c0 = arith.constant 0 : index
    %c0_0 = arith.constant 0 : index
    %0 = vector.load %arg2[%c0, %c0_0] : memref<16x32xf32, #tpu.memory_space<vmem>>, vector<16x32xf32>
    %c0_1 = arith.constant 0 : index
    %c0_2 = arith.constant 0 : index
    %1 = vector.load %arg1[%c0_1, %c0_2] : memref<16x32xf32, #tpu.memory_space<vmem>>, vector<16x32xf32>
    %2 = arith.subf %1, %0 : vector<16x32xf32>
    %c0_3 = arith.constant 0 : index
    %c0_4 = arith.constant 0 : index
    %3 = vector.load %arg3[%c0_3, %c0_4] : memref<64x32xf32, #tpu.memory_space<vmem>>, vector<64x32xf32>
    %cst = arith.constant dense<0.000000e+00> : vector<16x64xf32>
    %4 = tpu.matmul %2, %3, %cst {dimension_numbers = #tpu.dot_dimension_numbers<[1], [1], [0], [0], [0, 0, 1, 0], [], []>} : vector<16x32xf32>, vector<64x32xf32>, vector<16x64xf32> -> vector<16x64xf32>
    %5 = arith.mulf %2, %2 : vector<16x32xf32>
    %cst_5 = arith.constant dense<0.000000e+00> : vector<16xf32>
    %6 = vector.multi_reduction <add>, %5, %cst_5 [1] : vector<16x32xf32> to vector<16xf32>
    %7 = vector.shape_cast %6 : vector<16xf32> to vector<16x1xf32>
    %cst_6 = arith.constant 2.000000e+00 : f32
    %8 = vector.broadcast %cst_6 : f32 to vector<16x64xf32>
    %9 = arith.mulf %8, %4 : vector<16x64xf32>
    %10 = vector.broadcast %7 : vector<16x1xf32> to vector<16x64xf32>
    %11 = arith.subf %10, %9 : vector<16x64xf32>
    %c0_7 = arith.constant 0 : index
    %c0_8 = arith.constant 0 : index
    %12 = vector.load %arg4[%c0_7, %c0_8] : memref<1x64xf32, #tpu.memory_space<vmem>>, vector<1x64xf32>
    %13 = vector.broadcast %12 : vector<1x64xf32> to vector<16x64xf32>
    %14 = arith.addf %11, %13 : vector<16x64xf32>
    %cst_9 = arith.constant dense<0x7F800000> : vector<16xf32>
    %15 = vector.multi_reduction <minimumf>, %14, %cst_9 [1] : vector<16x64xf32> to vector<16xf32>
    %16 = vector.shape_cast %15 : vector<16xf32> to vector<16x1xf32>
    %17 = tpu.iota {dimensions = array<i32: 1>} : vector<16x64xi32>
    %18 = vector.broadcast %16 : vector<16x1xf32> to vector<16x64xf32>
    %19 = arith.cmpf oeq, %14, %18 : vector<16x64xf32>
    %c64_i32 = arith.constant 64 : i32
    %20 = vector.broadcast %c64_i32 : i32 to vector<16x64xi32>
    %21 = arith.select %19, %17, %20 : vector<16x64xi1>, vector<16x64xi32>
    %cst_10 = arith.constant dense<2147483647> : vector<16xi32>
    %22 = vector.multi_reduction <minsi>, %21, %cst_10 [1] : vector<16x64xi32> to vector<16xi32>
    %23 = vector.shape_cast %22 : vector<16xi32> to vector<16x1xi32>
    %24 = vector.broadcast %23 : vector<16x1xi32> to vector<16x64xi32>
    %25 = arith.cmpi eq, %17, %24 : vector<16x64xi32>
    %26 = arith.extui %25 : vector<16x64xi1> to vector<16x64xi32>
    %27 = arith.sitofp %26 : vector<16x64xi32> to vector<16x64xf32>
    %cst_11 = arith.constant dense<0.000000e+00> : vector<16x32xf32>
    %28 = tpu.matmul %27, %3, %cst_11 {dimension_numbers = #tpu.dot_dimension_numbers<[1], [0], [0], [1], [0, 0, 1, 1], [], []>} : vector<16x64xf32>, vector<64x32xf32>, vector<16x32xf32> -> vector<16x32xf32>
    %29 = arith.subf %28, %2 : vector<16x32xf32>
    %30 = arith.mulf %29, %29 : vector<16x32xf32>
    %cst_12 = arith.constant dense<0.000000e+00> : vector<16xf32>
    %31 = vector.multi_reduction <add>, %30, %cst_12 [1] : vector<16x32xf32> to vector<16xf32>
    %32 = vector.shape_cast %31 : vector<16xf32> to vector<16x1xf32>
    %c0_13 = arith.constant 0 : index
    %c0_14 = arith.constant 0 : index
    %33 = vector.load %arg7[%c0_13, %c0_14] : memref<16x1xf32, #tpu.memory_space<vmem>>, vector<16x1xf32>
    tpu.vector_store %arg7[%c0_13, %c0_14], %32 {strides = array<i32>} : memref<16x1xf32, #tpu.memory_space<vmem>>, vector<16x1xf32>,
    %c0_15 = arith.constant 0 : index
    %c0_16 = arith.constant 0 : index
    %34 = vector.load %arg6[%c0_15, %c0_16] : memref<16x1xi32, #tpu.memory_space<vmem>>, vector<16x1xi32>
    tpu.vector_store %arg6[%c0_15, %c0_16], %23 {strides = array<i32>} : memref<16x1xi32, #tpu.memory_space<vmem>>, vector<16x1xi32>,
    %35 = arith.addf %0, %28 : vector<16x32xf32>
    %c0_17 = arith.constant 0 : index
    %c0_18 = arith.constant 0 : index
    %36 = vector.load %arg5[%c0_17, %c0_18] : memref<16x32xf32, #tpu.memory_space<vmem>>, vector<16x32xf32>
    tpu.vector_store %arg5[%c0_17, %c0_18], %35 {strides = array<i32>} : memref<16x32xf32, #tpu.memory_space<vmem>>, vector<16x32xf32>,
    return
  }
  func.func @transform_0(%arg0: i32) -> (i32, i32) {
    %c0_i32 = arith.constant 0 : i32
    %c0_i32_0 = arith.constant 0 : i32
    return %arg0, %c0_i32 : i32, i32
  }
  func.func @transform_1(%arg0: i32) -> (i32, i32) {
    %c0_i32 = arith.constant 0 : i32
    %c0_i32_0 = arith.constant 0 : i32
    return %arg0, %c0_i32 : i32, i32
  }
  func.func @transform_2(%arg0: i32) -> (i32, i32) {
    %c0_i32 = arith.constant 0 : i32
    %c0_i32_0 = arith.constant 0 : i32
    %c0_i32_1 = arith.constant 0 : i32
    return %c0_i32, %c0_i32_0 : i32, i32
  }
  func.func @transform_3(%arg0: i32) -> (i32, i32) {
    %c0_i32 = arith.constant 0 : i32
    %c0_i32_0 = arith.constant 0 : i32
    %c0_i32_1 = arith.constant 0 : i32
    return %c0_i32, %c0_i32_0 : i32, i32
  }
  func.func @transform_4(%arg0: i32) -> (i32, i32) {
    %c0_i32 = arith.constant 0 : i32
    %c0_i32_0 = arith.constant 0 : i32
    return %arg0, %c0_i32 : i32, i32
  }
  func.func @transform_5(%arg0: i32) -> (i32, i32) {
    %c0_i32 = arith.constant 0 : i32
    %c0_i32_0 = arith.constant 0 : i32
    return %arg0, %c0_i32 : i32, i32
  }
  func.func @transform_6(%arg0: i32) -> (i32, i32) {
    %c0_i32 = arith.constant 0 : i32
    %c0_i32_0 = arith.constant 0 : i32
    return %arg0, %c0_i32 : i32, i32
  }
}

module attributes {stable_mosaic.version = 11 : i64} {
  func.func @_vq_kernel(%arg0: i32, %arg1: memref<16x16xf32, #tpu.memory_space<vmem>>, %arg2: memref<16x16xf32, #tpu.memory_space<vmem>>, %arg3: memref<32x16xf32, #tpu.memory_space<vmem>>, %arg4: memref<1x32xf32, #tpu.memory_space<vmem>>, %arg5: memref<16x16xf32, #tpu.memory_space<vmem>>, %arg6: memref<16x1xi32, #tpu.memory_space<vmem>>, %arg7: memref<16x1xf32, #tpu.memory_space<vmem>>) attributes {dimension_semantics = [#tpu.dimension_semantics<parallel>], iteration_bounds = array<i64: 1>, scalar_prefetch = 0 : i64, scratch_operands = 0 : i64, tpu.core_type = #tpu.core_type<tc>, window_params = [{transform_indices = @transform_0, window_bounds = array<i64: 16, 16>}, {transform_indices = @transform_1, window_bounds = array<i64: 16, 16>}, {pipeline_mode = #tpu.pipeline_mode<synchronous>, transform_indices = @transform_2, window_bounds = array<i64: 32, 16>}, {pipeline_mode = #tpu.pipeline_mode<synchronous>, transform_indices = @transform_3, window_bounds = array<i64: 1, 32>}, {transform_indices = @transform_4, window_bounds = array<i64: 16, 16>}, {transform_indices = @transform_5, window_bounds = array<i64: 16, 1>}, {transform_indices = @transform_6, window_bounds = array<i64: 16, 1>}]} {
    %c0 = arith.constant 0 : index
    %c0_0 = arith.constant 0 : index
    %0 = vector.load %arg2[%c0, %c0_0] : memref<16x16xf32, #tpu.memory_space<vmem>>, vector<16x16xf32>
    %c0_1 = arith.constant 0 : index
    %c0_2 = arith.constant 0 : index
    %1 = vector.load %arg1[%c0_1, %c0_2] : memref<16x16xf32, #tpu.memory_space<vmem>>, vector<16x16xf32>
    %2 = arith.subf %1, %0 : vector<16x16xf32>
    %c0_3 = arith.constant 0 : index
    %c0_4 = arith.constant 0 : index
    %3 = vector.load %arg3[%c0_3, %c0_4] : memref<32x16xf32, #tpu.memory_space<vmem>>, vector<32x16xf32>
    %cst = arith.constant dense<0.000000e+00> : vector<16x32xf32>
    %4 = tpu.matmul %2, %3, %cst {dimension_numbers = #tpu.dot_dimension_numbers<[1], [1], [0], [0], [0, 0, 1, 0], [], []>} : vector<16x16xf32>, vector<32x16xf32>, vector<16x32xf32> -> vector<16x32xf32>
    %5 = arith.mulf %2, %2 : vector<16x16xf32>
    %cst_5 = arith.constant dense<0.000000e+00> : vector<16xf32>
    %6 = vector.multi_reduction <add>, %5, %cst_5 [1] : vector<16x16xf32> to vector<16xf32>
    %7 = vector.shape_cast %6 : vector<16xf32> to vector<16x1xf32>
    %cst_6 = arith.constant 2.000000e+00 : f32
    %8 = vector.broadcast %cst_6 : f32 to vector<16x32xf32>
    %9 = arith.mulf %8, %4 : vector<16x32xf32>
    %10 = vector.broadcast %7 : vector<16x1xf32> to vector<16x32xf32>
    %11 = arith.subf %10, %9 : vector<16x32xf32>
    %c0_7 = arith.constant 0 : index
    %c0_8 = arith.constant 0 : index
    %12 = vector.load %arg4[%c0_7, %c0_8] : memref<1x32xf32, #tpu.memory_space<vmem>>, vector<1x32xf32>
    %13 = vector.broadcast %12 : vector<1x32xf32> to vector<16x32xf32>
    %14 = arith.addf %11, %13 : vector<16x32xf32>
    %cst_9 = arith.constant dense<0x7F800000> : vector<16xf32>
    %15 = vector.multi_reduction <minimumf>, %14, %cst_9 [1] : vector<16x32xf32> to vector<16xf32>
    %16 = vector.shape_cast %15 : vector<16xf32> to vector<16x1xf32>
    %17 = tpu.iota {dimensions = array<i32: 1>} : vector<16x32xi32>
    %18 = vector.broadcast %16 : vector<16x1xf32> to vector<16x32xf32>
    %19 = arith.cmpf oeq, %14, %18 : vector<16x32xf32>
    %c32_i32 = arith.constant 32 : i32
    %20 = vector.broadcast %c32_i32 : i32 to vector<16x32xi32>
    %21 = arith.select %19, %17, %20 : vector<16x32xi1>, vector<16x32xi32>
    %cst_10 = arith.constant dense<2147483647> : vector<16xi32>
    %22 = vector.multi_reduction <minsi>, %21, %cst_10 [1] : vector<16x32xi32> to vector<16xi32>
    %23 = vector.shape_cast %22 : vector<16xi32> to vector<16x1xi32>
    %24 = vector.broadcast %23 : vector<16x1xi32> to vector<16x32xi32>
    %25 = arith.cmpi eq, %17, %24 : vector<16x32xi32>
    %26 = arith.extui %25 : vector<16x32xi1> to vector<16x32xi32>
    %27 = arith.sitofp %26 : vector<16x32xi32> to vector<16x32xf32>
    %cst_11 = arith.constant dense<0.000000e+00> : vector<16x16xf32>
    %28 = tpu.matmul %27, %3, %cst_11 {dimension_numbers = #tpu.dot_dimension_numbers<[1], [0], [0], [1], [0, 0, 1, 1], [], []>} : vector<16x32xf32>, vector<32x16xf32>, vector<16x16xf32> -> vector<16x16xf32>
    %29 = arith.subf %28, %2 : vector<16x16xf32>
    %30 = arith.mulf %29, %29 : vector<16x16xf32>
    %cst_12 = arith.constant dense<0.000000e+00> : vector<16xf32>
    %31 = vector.multi_reduction <add>, %30, %cst_12 [1] : vector<16x16xf32> to vector<16xf32>
    %32 = vector.shape_cast %31 : vector<16xf32> to vector<16x1xf32>
    %c0_13 = arith.constant 0 : index
    %c0_14 = arith.constant 0 : index
    %33 = vector.load %arg7[%c0_13, %c0_14] : memref<16x1xf32, #tpu.memory_space<vmem>>, vector<16x1xf32>
    tpu.vector_store %arg7[%c0_13, %c0_14], %32 {strides = array<i32>} : memref<16x1xf32, #tpu.memory_space<vmem>>, vector<16x1xf32>,
    %c0_15 = arith.constant 0 : index
    %c0_16 = arith.constant 0 : index
    %34 = vector.load %arg6[%c0_15, %c0_16] : memref<16x1xi32, #tpu.memory_space<vmem>>, vector<16x1xi32>
    tpu.vector_store %arg6[%c0_15, %c0_16], %23 {strides = array<i32>} : memref<16x1xi32, #tpu.memory_space<vmem>>, vector<16x1xi32>,
    %35 = arith.addf %0, %28 : vector<16x16xf32>
    %c0_17 = arith.constant 0 : index
    %c0_18 = arith.constant 0 : index
    %36 = vector.load %arg5[%c0_17, %c0_18] : memref<16x16xf32, #tpu.memory_space<vmem>>, vector<16x16xf32>
    tpu.vector_store %arg5[%c0_17, %c0_18], %35 {strides = array<i32>} : memref<16x16xf32, #tpu.memory_space<vmem>>, vector<16x16xf32>,
    return
  }
  func.func @transform_0(%arg0: i32) -> (i32, i32) {
    %c0_i32 = arith.constant 0 : i32
    %c0_i32_0 = arith.constant 0 : i32
    return %arg0, %c0_i32 : i32, i32
  }
  func.func @transform_1(%arg0: i32) -> (i32, i32) {
    %c0_i32 = arith.constant 0 : i32
    %c0_i32_0 = arith.constant 0 : i32
    return %arg0, %c0_i32 : i32, i32
  }
  func.func @transform_2(%arg0: i32) -> (i32, i32) {
    %c0_i32 = arith.constant 0 : i32
    %c0_i32_0 = arith.constant 0 : i32
    %c0_i32_1 = arith.constant 0 : i32
    return %c0_i32, %c0_i32_0 : i32, i32
  }
  func.func @transform_3(%arg0: i32) -> (i32, i32) {
    %c0_i32 = arith.constant 0 : i32
    %c0_i32_0 = arith.constant 0 : i32
    %c0_i32_1 = arith.constant 0 : i32
    return %c0_i32, %c0_i32_0 : i32, i32
  }
  func.func @transform_4(%arg0: i32) -> (i32, i32) {
    %c0_i32 = arith.constant 0 : i32
    %c0_i32_0 = arith.constant 0 : i32
    return %arg0, %c0_i32 : i32, i32
  }
  func.func @transform_5(%arg0: i32) -> (i32, i32) {
    %c0_i32 = arith.constant 0 : i32
    %c0_i32_0 = arith.constant 0 : i32
    return %arg0, %c0_i32 : i32, i32
  }
  func.func @transform_6(%arg0: i32) -> (i32, i32) {
    %c0_i32 = arith.constant 0 : i32
    %c0_i32_0 = arith.constant 0 : i32
    return %arg0, %c0_i32 : i32, i32
  }
}

</mosaic_0001>

<llo_original>
// kernel: multi_stage_vq_forward.3
$region0: #{multi_stage_vq_forward.3}
  #allocation0 [shape = 'u32[]', space=smem, size = 0x4, offset = 0x4, fixed_abs, tag = 'smem constant byte address 0x4 - core index']
  #allocation1 [shape = 'u32[72,128]{1,0:T(1,128)}', space=vmem, size = 0x9000, scoped, tag = 'internal scratch']
  %s0 = inlined_call_operand.vmem [shape: f32[16,32], index: 0, kind: input, shape index: {}]
  %s1 = inlined_call_operand.vmem [shape: f32[16,32], index: 1, kind: input, shape index: {}, may-alias: {1,4}]
  %s2 = inlined_call_operand.vmem [shape: f32[64,32], index: 2, kind: input, shape index: {}]
  %s3 = inlined_call_operand.vmem [shape: f32[1,64], index: 3, kind: input, shape index: {}]
  %s4 = inlined_call_operand.vmem [shape: f32[16,32], index: 4, kind: output, shape index: {0}, may-alias: {1,4}]
  %s5 = inlined_call_operand.vmem [shape: s32[16,1], index: 5, kind: output, shape index: {1}]
  %s6 = inlined_call_operand.vmem [shape: f32[16,1], index: 6, kind: output, shape index: {2}]
  %7 = xla_tuple %s4, %s5, %s6
  %s8 = sld [smem:[#allocation0]]
  $region42: #{multi_stage_vq_forward.3} parent=0
    _
  %s10 = ssub.s32 1, %s8
  %s11 = scalar_select 0, %s10, %s8
  // Predicated region
  $region2: #{multi_stage_vq_forward.3} parent=0 // pred_check
    _
  $region3: #{multi_stage_vq_forward.3} parent=0 // pred_check_branch
    %13 = sbr.rel (0) target = $region5
  $region4: #{multi_stage_vq_forward.3} parent=0 // pred_region
    _
  $region5: #{multi_stage_vq_forward.3} parent=0 // pred_fallthru
    _
  // Predicated region
  $region6: #{multi_stage_vq_forward.3} parent=0 // pred_check
    _
  $region7: #{multi_stage_vq_forward.3} parent=0 // pred_check_branch
    %15 = sbr.rel (0) target = $region9
  $region8: #{multi_stage_vq_forward.3} parent=0 // pred_region
    _
  $region9: #{multi_stage_vq_forward.3} parent=0 // pred_fallthru
    _
  // Predicated region
  $region10: #{multi_stage_vq_forward.3} parent=0 // pred_check
    _
  $region11: #{multi_stage_vq_forward.3} parent=0 // pred_check_branch
    %17 = sbr.rel (0) target = $region13
  $region12: #{multi_stage_vq_forward.3} parent=0 // pred_region
    _
  $region13: #{multi_stage_vq_forward.3} parent=0 // pred_fallthru
    _
  // Predicated region
  $region14: #{multi_stage_vq_forward.3} parent=0 // pred_check
    _
  $region15: #{multi_stage_vq_forward.3} parent=0 // pred_check_branch
    %19 = sbr.rel (0) target = $region17
  $region16: #{multi_stage_vq_forward.3} parent=0 // pred_region
    _
  $region17: #{multi_stage_vq_forward.3} parent=0 // pred_fallthru
    _
  %v20 = vld [vmem:[%s1] sm:$0xff]
  %v21 = vld [vmem:[%s1 + $0x8] sm:$0xff]
  %v22 = vld [vmem:[%s0] sm:$0xff]
  %v23 = vld [vmem:[%s0 + $0x8] sm:$0xff]
  %v24 = vsub.f32 %v22, %v20
  %v25 = vsub.f32 %v23, %v21
  %v26 = vld [vmem:[%s2] sm:$0xff]
  %v27 = vld [vmem:[%s2 + $0x8] sm:$0xff]
  %v28 = vld [vmem:[%s2 + $0x10] sm:$0xff]
  %v29 = vld [vmem:[%s2 + $0x18] sm:$0xff]
  %v30 = vld [vmem:[%s2 + $0x20] sm:$0xff]
  %v31 = vld [vmem:[%s2 + $0x28] sm:$0xff]
  %v32 = vld [vmem:[%s2 + $0x30] sm:$0xff]
  %v33 = vld [vmem:[%s2 + $0x38] sm:$0xff]
  %vm34 = vcmask 261120
  %v36 = vsel %vm34, %v24, 0
  %v39 = vsel %vm34, %v25, 0
  %v42 = vsel %vm34, %v26, 0
  %v45 = vsel %vm34, %v27, 0
  %v48 = vsel %vm34, %v28, 0
  %v51 = vsel %vm34, %v29, 0
  %v54 = vsel %vm34, %v30, 0
  %v57 = vsel %vm34, %v31, 0
  %v60 = vsel %vm34, %v32, 0
  %v63 = vsel %vm34, %v33, 0
  %65 = vmatpush.xpose.msra.mxu0 0.0
  %66 = vmatpush.xpose.msra.mxu0 0.0
  %67 = vmatpush.xpose.msra.mxu0 0.0
  %68 = vmatpush.xpose.msra.mxu0 0.0
  %69 = vmatpush.xpose.msra.mxu0 0.0
  %70 = vmatpush.xpose.msra.mxu0 0.0
  %71 = vmatpush.xpose.msra.mxu0 0.0
  %72 = vmatpush.xpose.msra.mxu0 0.0
  %73 = vmatpush.xpose.msra.mxu0 %v63
  %74 = vmatpush.xpose.msra.mxu0 %v60
  %75 = vmatpush.xpose.msra.mxu0 %v57
  %76 = vmatpush.xpose.msra.mxu0 %v54
  %77 = vmatpush.xpose.msra.mxu0 %v51
  %78 = vmatpush.xpose.msra.mxu0 %v48
  %79 = vmatpush.xpose.msra.mxu0 %v45
  %80 = vmatpush.xpose.msra.mxu0 %v42
  %81 = vmatmul.f32.gmra.mxu0 %v36
  %v82 = vpop.f32.mrf.mxu0
  %v83 = vadd.f32 0.0, %v82
  %84 = vmatmul.f32.gmra.mxu0 %v39
  %v85 = vpop.f32.mrf.mxu0
  %v86 = vadd.f32 0.0, %v85
  %87 = vdwg.mxu0
  %v88 = vmul.f32 %v24, %v24
  %v89 = vmul.f32 %v25, %v25
  %v90 = vsel %vm34, %v88, 0.0
  %91 = vadd.xlane.f32.xlu0 %v90
  %v92 = vpop.xlane.xlu0 %91
  %v93 = vsel %vm34, %v89, 0.0
  %94 = vadd.xlane.f32.xlu0 %v93
  %v95 = vpop.xlane.xlu0 %94
  %v96 = vmul.f32 %v83, 2.0
  %v97 = vmul.f32 %v86, 2.0
  %v98 = vsub.f32 %v92, %v96
  %v99 = vsub.f32 %v95, %v97
  %v100 = vld [vmem:[%s3] sm:$0x1]
  %v102 = vperm.slane %v100, 0
  %v104 = vadd.f32 %v98, %v102
  %v105 = vadd.f32 %v99, %v102
  %vm106 = vcmask 523264
  %v107 = vsel %vm106, %v104, inf
  %108 = vmin.xlane.f32.xlu0 %v107
  %v109 = vpop.xlane.xlu0 %108
  %v110 = vsel %vm106, %v105, inf
  %111 = vmin.xlane.f32.xlu0 %v110
  %v112 = vpop.xlane.xlu0 %111
  %v113 = vlaneseq
  %v114 = vand.u32 %v113, 127
  %vm115 = vcmp.eq.f32.partialorder %v104, %v109
  %vm116 = vcmp.eq.f32.partialorder %v105, %v112
  %v117 = vsel %vm115, %v114, 64
  %v118 = vsel %vm116, %v114, 64
  %v119 = vsel %vm106, %v117, 2147483647
  %v120 = vand.u32 %v119, 65535
  %v121 = vshra.s32 %v119, 16
  %v122 = vcvt.s32.f32 %v120
  %v123 = vcvt.s32.f32 %v121
  %124 = vmin.xlane.f32.xlu0 %v123
  %v125 = vpop.xlane.xlu0 %124
  %vm126 = vcmp.eq.f32.partialorder %v123, %v125
  %v127 = vsel %vm126, %v122, inf
  %128 = vmin.xlane.f32.xlu0 %v127
  %v129 = vpop.xlane.xlu0 %128
  %v130 = vcvt.f32.s32 %v129
  %v131 = vcvt.f32.s32 %v125
  %v132 = vshll.u32 %v131, 16
  %v133 = vadd.s32 %v132, %v130
  %v134 = vsel %vm106, %v118, 2147483647
  %v135 = vand.u32 %v134, 65535
  %v136 = vshra.s32 %v134, 16
  %v137 = vcvt.s32.f32 %v135
  %v138 = vcvt.s32.f32 %v136
  %139 = vmin.xlane.f32.xlu0 %v138
  %v140 = vpop.xlane.xlu0 %139
  %vm141 = vcmp.eq.f32.partialorder %v138, %v140
  %v142 = vsel %vm141, %v137, inf
  %143 = vmin.xlane.f32.xlu0 %v142
  %v144 = vpop.xlane.xlu0 %143
  %v145 = vcvt.f32.s32 %v144
  %v146 = vcvt.f32.s32 %v140
  %v147 = vshll.u32 %v146, 16
  %v148 = vadd.s32 %v147, %v145
  %vm149 = vcmp.eq.s32.totalorder %v114, %v133
  %vm150 = vcmp.eq.s32.totalorder %v114, %v148
  %v151 = vsel %vm149, 1, 0
  %v152 = vsel %vm150, 1, 0
  %v153 = vcvt.s32.f32 %v151
  %v154 = vcvt.s32.f32 %v152
  %v156 = vsel %vm106, %v153, 0
  %v159 = vsel %vm106, %v154, 0
  %161 = vmatpush.msra.mxu0 0.0
  %162 = vmatpush.msra.mxu0 0.0
  %163 = vmatpush.msra.mxu0 0.0
  %164 = vmatpush.msra.mxu0 0.0
  %165 = vmatpush.msra.mxu0 0.0
  %166 = vmatpush.msra.mxu0 0.0
  %167 = vmatpush.msra.mxu0 0.0
  %168 = vmatpush.msra.mxu0 0.0
  %169 = vmatpush.msra.mxu0 %v33
  %170 = vmatpush.msra.mxu0 %v32
  %171 = vmatpush.msra.mxu0 %v31
  %172 = vmatpush.msra.mxu0 %v30
  %173 = vmatpush.msra.mxu0 %v29
  %174 = vmatpush.msra.mxu0 %v28
  %175 = vmatpush.msra.mxu0 %v27
  %176 = vmatpush.msra.mxu0 %v26
  %177 = vmatmul.f32.gmra.mxu0 %v156
  %v178 = vpop.f32.mrf.mxu0
  %v179 = vadd.f32 0.0, %v178
  %180 = vmatmul.f32.gmra.mxu0 %v159
  %v181 = vpop.f32.mrf.mxu0
  %v182 = vadd.f32 0.0, %v181
  %183 = vdwg.mxu0
  %v184 = vsub.f32 %v179, %v24
  %v185 = vsub.f32 %v182, %v25
  %v186 = vmul.f32 %v184, %v184
  %v187 = vmul.f32 %v185, %v185
  %v188 = vsel %vm34, %v186, 0.0
  %189 = vadd.xlane.f32.xlu0 %v188
  %v190 = vpop.xlane.xlu0 %189
  %v191 = vsel %vm34, %v187, 0.0
  %192 = vadd.xlane.f32.xlu0 %v191
  %v193 = vpop.xlane.xlu0 %192
  %vm194 = vcmask 7168
  %195 = vst.msk [vmem:[%s6] sm:$0xff] %vm194, %v190
  %196 = vst.msk [vmem:[%s6 + $0x8] sm:$0xff] %vm194, %v193
  %197 = vst.msk [vmem:[%s5] sm:$0xff] %vm194, %v133
  %198 = vst.msk [vmem:[%s5 + $0x8] sm:$0xff] %vm194, %v148
  %v199 = vadd.f32 %v20, %v179
  %v200 = vadd.f32 %v21, %v182
  %201 = vst.msk [vmem:[%s4] sm:$0xff] %vm34, %v199
  %202 = vst.msk [vmem:[%s4 + $0x8] sm:$0xff] %vm34, %v200
  // Predicated region
  $region18: #{multi_stage_vq_forward.3} parent=0 // pred_check
    _
  $region19: #{multi_stage_vq_forward.3} parent=0 // pred_check_branch
    %204 = sbr.rel (0) target = $region21
  $region20: #{multi_stage_vq_forward.3} parent=0 // pred_region
    _
  $region21: #{multi_stage_vq_forward.3} parent=0 // pred_fallthru
    _
  // Predicated region
  $region22: #{multi_stage_vq_forward.3} parent=0 // pred_check
    _
  $region23: #{multi_stage_vq_forward.3} parent=0 // pred_check_branch
    %206 = sbr.rel (0) target = $region25
  $region24: #{multi_stage_vq_forward.3} parent=0 // pred_region
    _
  $region25: #{multi_stage_vq_forward.3} parent=0 // pred_fallthru
    _
  // Predicated region
  $region26: #{multi_stage_vq_forward.3} parent=0 // pred_check
    _
  $region27: #{multi_stage_vq_forward.3} parent=0 // pred_check_branch
    %208 = sbr.rel (0) target = $region29
  $region28: #{multi_stage_vq_forward.3} parent=0 // pred_region
    _
  $region29: #{multi_stage_vq_forward.3} parent=0 // pred_fallthru
    _
  // Predicated region
  $region30: #{multi_stage_vq_forward.3} parent=0 // pred_check
    _
  $region31: #{multi_stage_vq_forward.3} parent=0 // pred_check_branch
    %210 = sbr.rel (0) target = $region33
  $region32: #{multi_stage_vq_forward.3} parent=0 // pred_region
    _
  $region33: #{multi_stage_vq_forward.3} parent=0 // pred_fallthru
    _
  // Predicated region
  $region34: #{multi_stage_vq_forward.3} parent=0 // pred_check
    _
  $region35: #{multi_stage_vq_forward.3} parent=0 // pred_check_branch
    %212 = sbr.rel (0) target = $region37
  $region36: #{multi_stage_vq_forward.3} parent=0 // pred_region
    _
  $region37: #{multi_stage_vq_forward.3} parent=0 // pred_fallthru
    _
  // Predicated region
  $region38: #{multi_stage_vq_forward.3} parent=0 // pred_check
    _
  $region39: #{multi_stage_vq_forward.3} parent=0 // pred_check_branch
    %214 = sbr.rel (0) target = $region41
  $region40: #{multi_stage_vq_forward.3} parent=0 // pred_region
    _
  $region41: #{multi_stage_vq_forward.3} parent=0 // pred_fallthru
    _

// kernel: multi_stage_vq_forward.4
$region0: #{multi_stage_vq_forward.4}
  #allocation0 [shape = 'u32[]', space=smem, size = 0x4, offset = 0x4, fixed_abs, tag = 'smem constant byte address 0x4 - core index']
  #allocation1 [shape = 'u32[72,128]{1,0:T(1,128)}', space=vmem, size = 0x9000, scoped, tag = 'internal scratch']
  %s0 = inlined_call_operand.vmem [shape: f32[16,16], index: 0, kind: input, shape index: {}]
  %s1 = inlined_call_operand.vmem [shape: f32[16,16], index: 1, kind: input, shape index: {}, may-alias: {1,4}]
  %s2 = inlined_call_operand.vmem [shape: f32[32,16], index: 2, kind: input, shape index: {}]
  %s3 = inlined_call_operand.vmem [shape: f32[1,32], index: 3, kind: input, shape index: {}]
  %s4 = inlined_call_operand.vmem [shape: f32[16,16], index: 4, kind: output, shape index: {0}, may-alias: {1,4}]
  %s5 = inlined_call_operand.vmem [shape: s32[16,1], index: 5, kind: output, shape index: {1}]
  %s6 = inlined_call_operand.vmem [shape: f32[16,1], index: 6, kind: output, shape index: {2}]
  %7 = xla_tuple %s4, %s5, %s6
  %s8 = sld [smem:[#allocation0]]
  $region42: #{multi_stage_vq_forward.4} parent=0
    _
  %s10 = ssub.s32 1, %s8
  %s11 = scalar_select 0, %s10, %s8
  // Predicated region
  $region2: #{multi_stage_vq_forward.4} parent=0 // pred_check
    _
  $region3: #{multi_stage_vq_forward.4} parent=0 // pred_check_branch
    %13 = sbr.rel (0) target = $region5
  $region4: #{multi_stage_vq_forward.4} parent=0 // pred_region
    _
  $region5: #{multi_stage_vq_forward.4} parent=0 // pred_fallthru
    _
  // Predicated region
  $region6: #{multi_stage_vq_forward.4} parent=0 // pred_check
    _
  $region7: #{multi_stage_vq_forward.4} parent=0 // pred_check_branch
    %15 = sbr.rel (0) target = $region9
  $region8: #{multi_stage_vq_forward.4} parent=0 // pred_region
    _
  $region9: #{multi_stage_vq_forward.4} parent=0 // pred_fallthru
    _
  // Predicated region
  $region10: #{multi_stage_vq_forward.4} parent=0 // pred_check
    _
  $region11: #{multi_stage_vq_forward.4} parent=0 // pred_check_branch
    %17 = sbr.rel (0) target = $region13
  $region12: #{multi_stage_vq_forward.4} parent=0 // pred_region
    _
  $region13: #{multi_stage_vq_forward.4} parent=0 // pred_fallthru
    _
  // Predicated region
  $region14: #{multi_stage_vq_forward.4} parent=0 // pred_check
    _
  $region15: #{multi_stage_vq_forward.4} parent=0 // pred_check_branch
    %19 = sbr.rel (0) target = $region17
  $region16: #{multi_stage_vq_forward.4} parent=0 // pred_region
    _
  $region17: #{multi_stage_vq_forward.4} parent=0 // pred_fallthru
    _
  %v20 = vld [vmem:[%s1] sm:$0xff]
  %v21 = vld [vmem:[%s1 + $0x8] sm:$0xff]
  %v22 = vld [vmem:[%s0] sm:$0xff]
  %v23 = vld [vmem:[%s0 + $0x8] sm:$0xff]
  %v24 = vsub.f32 %v22, %v20
  %v25 = vsub.f32 %v23, %v21
  %v26 = vld [vmem:[%s2] sm:$0xff]
  %v27 = vld [vmem:[%s2 + $0x8] sm:$0xff]
  %v28 = vld [vmem:[%s2 + $0x10] sm:$0xff]
  %v29 = vld [vmem:[%s2 + $0x18] sm:$0xff]
  %vm30 = vcmask 130048
  %v32 = vsel %vm30, %v24, 0
  %v35 = vsel %vm30, %v25, 0
  %v38 = vsel %vm30, %v26, 0
  %v41 = vsel %vm30, %v27, 0
  %v44 = vsel %vm30, %v28, 0
  %v47 = vsel %vm30, %v29, 0
  %49 = vmatpush.xpose.msra.mxu0 0.0
  %50 = vmatpush.xpose.msra.mxu0 0.0
  %51 = vmatpush.xpose.msra.mxu0 0.0
  %52 = vmatpush.xpose.msra.mxu0 0.0
  %53 = vmatpush.xpose.msra.mxu0 0.0
  %54 = vmatpush.xpose.msra.mxu0 0.0
  %55 = vmatpush.xpose.msra.mxu0 0.0
  %56 = vmatpush.xpose.msra.mxu0 0.0
  %57 = vmatpush.xpose.msra.mxu0 0.0
  %58 = vmatpush.xpose.msra.mxu0 0.0
  %59 = vmatpush.xpose.msra.mxu0 0.0
  %60 = vmatpush.xpose.msra.mxu0 0.0
  %61 = vmatpush.xpose.msra.mxu0 %v47
  %62 = vmatpush.xpose.msra.mxu0 %v44
  %63 = vmatpush.xpose.msra.mxu0 %v41
  %64 = vmatpush.xpose.msra.mxu0 %v38
  %65 = vmatmul.f32.gmra.mxu0 %v32
  %v66 = vpop.f32.mrf.mxu0
  %v67 = vadd.f32 0.0, %v66
  %68 = vmatmul.f32.gmra.mxu0 %v35
  %v69 = vpop.f32.mrf.mxu0
  %v70 = vadd.f32 0.0, %v69
  %71 = vdwg.mxu0
  %v72 = vmul.f32 %v24, %v24
  %v73 = vmul.f32 %v25, %v25
  %v74 = vsel %vm30, %v72, 0.0
  %75 = vadd.xlane.f32.xlu0 %v74
  %v76 = vpop.xlane.xlu0 %75
  %v77 = vsel %vm30, %v73, 0.0
  %78 = vadd.xlane.f32.xlu0 %v77
  %v79 = vpop.xlane.xlu0 %78
  %v80 = vmul.f32 %v67, 2.0
  %v81 = vmul.f32 %v70, 2.0
  %v82 = vsub.f32 %v76, %v80
  %v83 = vsub.f32 %v79, %v81
  %v84 = vld [vmem:[%s3] sm:$0x1]
  %v86 = vperm.slane %v84, 0
  %v88 = vadd.f32 %v82, %v86
  %v89 = vadd.f32 %v83, %v86
  %vm90 = vcmask 261120
  %v91 = vsel %vm90, %v88, inf
  %92 = vmin.xlane.f32.xlu0 %v91
  %v93 = vpop.xlane.xlu0 %92
  %v94 = vsel %vm90, %v89, inf
  %95 = vmin.xlane.f32.xlu0 %v94
  %v96 = vpop.xlane.xlu0 %95
  %v97 = vlaneseq
  %v98 = vand.u32 %v97, 127
  %vm99 = vcmp.eq.f32.partialorder %v88, %v93
  %vm100 = vcmp.eq.f32.partialorder %v89, %v96
  %v101 = vsel %vm99, %v98, 32
  %v102 = vsel %vm100, %v98, 32
  %v103 = vsel %vm90, %v101, 2147483647
  %v104 = vand.u32 %v103, 65535
  %v105 = vshra.s32 %v103, 16
  %v106 = vcvt.s32.f32 %v104
  %v107 = vcvt.s32.f32 %v105
  %108 = vmin.xlane.f32.xlu0 %v107
  %v109 = vpop.xlane.xlu0 %108
  %vm110 = vcmp.eq.f32.partialorder %v107, %v109
  %v111 = vsel %vm110, %v106, inf
  %112 = vmin.xlane.f32.xlu0 %v111
  %v113 = vpop.xlane.xlu0 %112
  %v114 = vcvt.f32.s32 %v113
  %v115 = vcvt.f32.s32 %v109
  %v116 = vshll.u32 %v115, 16
  %v117 = vadd.s32 %v116, %v114
  %v118 = vsel %vm90, %v102, 2147483647
  %v119 = vand.u32 %v118, 65535
  %v120 = vshra.s32 %v118, 16
  %v121 = vcvt.s32.f32 %v119
  %v122 = vcvt.s32.f32 %v120
  %123 = vmin.xlane.f32.xlu0 %v122
  %v124 = vpop.xlane.xlu0 %123
  %vm125 = vcmp.eq.f32.partialorder %v122, %v124
  %v126 = vsel %vm125, %v121, inf
  %127 = vmin.xlane.f32.xlu0 %v126
  %v128 = vpop.xlane.xlu0 %127
  %v129 = vcvt.f32.s32 %v128
  %v130 = vcvt.f32.s32 %v124
  %v131 = vshll.u32 %v130, 16
  %v132 = vadd.s32 %v131, %v129
  %vm133 = vcmp.eq.s32.totalorder %v98, %v117
  %vm134 = vcmp.eq.s32.totalorder %v98, %v132
  %v135 = vsel %vm133, 1, 0
  %v136 = vsel %vm134, 1, 0
  %v137 = vcvt.s32.f32 %v135
  %v138 = vcvt.s32.f32 %v136
  %v140 = vsel %vm90, %v137, 0
  %v143 = vsel %vm90, %v138, 0
  %145 = vmatpush.msra.mxu0 0.0
  %146 = vmatpush.msra.mxu0 0.0
  %147 = vmatpush.msra.mxu0 0.0
  %148 = vmatpush.msra.mxu0 0.0
  %149 = vmatpush.msra.mxu0 0.0
  %150 = vmatpush.msra.mxu0 0.0
  %151 = vmatpush.msra.mxu0 0.0
  %152 = vmatpush.msra.mxu0 0.0
  %153 = vmatpush.msra.mxu0 0.0
  %154 = vmatpush.msra.mxu0 0.0
  %155 = vmatpush.msra.mxu0 0.0
  %156 = vmatpush.msra.mxu0 0.0
  %157 = vmatpush.msra.mxu0 %v29
  %158 = vmatpush.msra.mxu0 %v28
  %159 = vmatpush.msra.mxu0 %v27
  %160 = vmatpush.msra.mxu0 %v26
  %161 = vmatmul.f32.gmra.mxu0 %v140
  %v162 = vpop.f32.mrf.mxu0
  %v163 = vadd.f32 0.0, %v162
  %164 = vmatmul.f32.gmra.mxu0 %v143
  %v165 = vpop.f32.mrf.mxu0
  %v166 = vadd.f32 0.0, %v165
  %167 = vdwg.mxu0
  %v168 = vsub.f32 %v163, %v24
  %v169 = vsub.f32 %v166, %v25
  %v170 = vmul.f32 %v168, %v168
  %v171 = vmul.f32 %v169, %v169
  %v172 = vsel %vm30, %v170, 0.0
  %173 = vadd.xlane.f32.xlu0 %v172
  %v174 = vpop.xlane.xlu0 %173
  %v175 = vsel %vm30, %v171, 0.0
  %176 = vadd.xlane.f32.xlu0 %v175
  %v177 = vpop.xlane.xlu0 %176
  %vm178 = vcmask 7168
  %179 = vst.msk [vmem:[%s6] sm:$0xff] %vm178, %v174
  %180 = vst.msk [vmem:[%s6 + $0x8] sm:$0xff] %vm178, %v177
  %181 = vst.msk [vmem:[%s5] sm:$0xff] %vm178, %v117
  %182 = vst.msk [vmem:[%s5 + $0x8] sm:$0xff] %vm178, %v132
  %v183 = vadd.f32 %v20, %v163
  %v184 = vadd.f32 %v21, %v166
  %185 = vst.msk [vmem:[%s4] sm:$0xff] %vm30, %v183
  %186 = vst.msk [vmem:[%s4 + $0x8] sm:$0xff] %vm30, %v184
  // Predicated region
  $region18: #{multi_stage_vq_forward.4} parent=0 // pred_check
    _
  $region19: #{multi_stage_vq_forward.4} parent=0 // pred_check_branch
    %188 = sbr.rel (0) target = $region21
  $region20: #{multi_stage_vq_forward.4} parent=0 // pred_region
    _
  $region21: #{multi_stage_vq_forward.4} parent=0 // pred_fallthru
    _
  // Predicated region
  $region22: #{multi_stage_vq_forward.4} parent=0 // pred_check
    _
  $region23: #{multi_stage_vq_forward.4} parent=0 // pred_check_branch
    %190 = sbr.rel (0) target = $region25
  $region24: #{multi_stage_vq_forward.4} parent=0 // pred_region
    _
  $region25: #{multi_stage_vq_forward.4} parent=0 // pred_fallthru
    _
  // Predicated region
  $region26: #{multi_stage_vq_forward.4} parent=0 // pred_check
    _
  $region27: #{multi_stage_vq_forward.4} parent=0 // pred_check_branch
    %192 = sbr.rel (0) target = $region29
  $region28: #{multi_stage_vq_forward.4} parent=0 // pred_region
    _
  $region29: #{multi_stage_vq_forward.4} parent=0 // pred_fallthru
    _
  // Predicated region
  $region30: #{multi_stage_vq_forward.4} parent=0 // pred_check
    _
  $region31: #{multi_stage_vq_forward.4} parent=0 // pred_check_branch
    %194 = sbr.rel (0) target = $region33
  $region32: #{multi_stage_vq_forward.4} parent=0 // pred_region
    _
  $region33: #{multi_stage_vq_forward.4} parent=0 // pred_fallthru
    _
  // Predicated region
  $region34: #{multi_stage_vq_forward.4} parent=0 // pred_check
    _
  $region35: #{multi_stage_vq_forward.4} parent=0 // pred_check_branch
    %196 = sbr.rel (0) target = $region37
  $region36: #{multi_stage_vq_forward.4} parent=0 // pred_region
    _
  $region37: #{multi_stage_vq_forward.4} parent=0 // pred_fallthru
    _
  // Predicated region
  $region38: #{multi_stage_vq_forward.4} parent=0 // pred_check
    _
  $region39: #{multi_stage_vq_forward.4} parent=0 // pred_check_branch
    %198 = sbr.rel (0) target = $region41
  $region40: #{multi_stage_vq_forward.4} parent=0 // pred_region
    _
  $region41: #{multi_stage_vq_forward.4} parent=0 // pred_fallthru
    _

</llo_original>
